<compile_context>
chip_gen: v6e
topology: v6e:2x2x1
jax: 0.10.0
libtpu: 0.0.40
codegen_flags: <defaults>
</compile_context>

<pallas_src>
import functools

import jax
import jax.numpy as jnp
from jax.experimental import pallas as pl
from jax.experimental.pallas import tpu as pltpu


def _round_up(n, m):
    return ((n + m - 1) // m) * m


def highway_kernel(x_ref, w_ref, b_ref, o_ref):
    """All highway layers for one row-tile of x.

    x_ref : (block_rows, hp)          input tile (hp = hidden padded to 128)
    w_ref : (num_layers, hp, 2*hp)    fused [transform | gate] weights, (in, out)
    b_ref : (num_layers, 1, 2*hp)     fused [transform | gate] biases (f32)
    o_ref : (block_rows, hp)          output tile
    """
    num_layers, hp, _ = w_ref.shape
    x = x_ref[...].astype(jnp.float32)

    # Static unroll over layers (num_layers is a trace-time constant).
    for l in range(num_layers):
        # One fused N=2H matmul per layer; bf16 (or f32) operands, f32 accum.
        tz = jnp.dot(x.astype(w_ref.dtype), w_ref[l],
                     preferred_element_type=jnp.float32)
        tz = tz + b_ref[l].astype(jnp.float32)
        t = jnp.maximum(tz[:, :hp], 0.0)                         # ReLU(transform)
        # sigmoid(z) = 1 / (1 + exp(-z)); divide on the (otherwise idle) EUP.
        g = pl.reciprocal(1.0 + jnp.exp(-tz[:, hp:]), approx=True)
        # g*t + (1-g)*x  ==  x + g*(t - x)   (one fewer full-tile multiply)
        x = x + g * (t - x)

    o_ref[...] = x.astype(o_ref.dtype)


@functools.partial(jax.jit, static_argnames=("block_rows", "matmul_dtype"))
def highway_encoder(x, wt, bt, wg, bg, *, block_rows=256,
                    matmul_dtype=jnp.bfloat16):
    """Highway network forward pass.

    x  : (..., hidden)
    wt : (num_layers, hidden, hidden)  transform weights, (in, out) layout
    bt : (num_layers, 1, hidden)       transform biases
    wg : (num_layers, hidden, hidden)  gate weights, (in, out) layout
    bg : (num_layers, 1, hidden)       gate biases
    """
    orig_shape = x.shape
    hidden = orig_shape[-1]
    x2 = x.reshape(-1, hidden)
    rows = x2.shape[0]
    num_layers = wt.shape[0]

    # Lane-dense hidden (multiple of 128) and row-tile-aligned rows.
    hp = _round_up(hidden, 128)
    br = _round_up(min(block_rows, _round_up(rows, 8)), 8)
    rows_p = _round_up(rows, br)
    ph = hp - hidden

    # Zero padding keeps semantics exact: padded input columns are 0, padded
    # weight rows/cols and biases are 0, so padded output columns stay 0.
    x_p = jnp.pad(x2, ((0, rows_p - rows), (0, ph)))
    wt_p = jnp.pad(wt, ((0, 0), (0, ph), (0, ph)))
    wg_p = jnp.pad(wg, ((0, 0), (0, ph), (0, ph)))
    bt_p = jnp.pad(bt, ((0, 0), (0, 0), (0, ph)))
    bg_p = jnp.pad(bg, ((0, 0), (0, 0), (0, ph)))

    # Fuse transform + gate into one weight / bias tensor per layer.
    w = jnp.concatenate([wt_p, wg_p], axis=-1).astype(matmul_dtype)
    b = jnp.concatenate([bt_p, bg_p], axis=-1).astype(jnp.float32)

    # VMEM budget: weights/biases are grid-invariant but double-buffered by the
    # default pipeliner; row tiles are double-buffered in and out; the body
    # keeps a few f32 temporaries live.  Raise the scoped limit only if needed.
    w_bytes = 2 * w.size * w.dtype.itemsize
    b_bytes = 2 * b.size * 4
    io_bytes = 2 * 2 * br * hp * x_p.dtype.itemsize
    live_bytes = 6 * br * hp * 4
    est = int(1.4 * (w_bytes + b_bytes + io_bytes + live_bytes))
    vmem_limit = None
    if est > 32 * 1024 * 1024:
        try:
            cap = int(pltpu.get_tpu_info().vmem_capacity_bytes * 3 // 4)
        except Exception:
            cap = 48 * 1024 * 1024
        vmem_limit = min(est, cap)

    grid = (rows_p // br,)

    out = pl.pallas_call(
        highway_kernel,
        out_shape=jax.ShapeDtypeStruct((rows_p, hp), x.dtype),
        grid_spec=pltpu.PrefetchScalarGridSpec(
            num_scalar_prefetch=0,
            grid=grid,
            in_specs=[
                pl.BlockSpec((br, hp), lambda i: (i, 0)),
                pl.BlockSpec((num_layers, hp, 2 * hp), lambda i: (0, 0, 0)),
                pl.BlockSpec((num_layers, 1, 2 * hp), lambda i: (0, 0, 0)),
            ],
            out_specs=pl.BlockSpec((br, hp), lambda i: (i, 0)),
        ),
        # Note: on v7x, additional wins are sharding the row axis across both
        # TensorCores (CORE_PARALLEL) and single-buffering the grid-invariant
        # weight input (pl.Buffered(1)); kept off here for portability.
        compiler_params=pltpu.CompilerParams(
            dimension_semantics=("parallel",),
            vmem_limit_bytes=vmem_limit),
    )(x_p, w, b)

    return out[:rows, :hidden].reshape(orig_shape)


def reference_highway(x, wt, bt, wg, bg):
    """Pure-JAX f32 reference matching the PyTorch forward exactly."""
    num_layers = wt.shape[0]
    x = x.astype(jnp.float32)
    for l in range(num_layers):
        t = jax.nn.relu(x @ wt[l] + bt[l])
        g = jax.nn.sigmoid(x @ wg[l] + bg[l])
        x = g * t + (1.0 - g) * x
    return x


if __name__ == "__main__":
    num_layers = 2
    hidden = 32
    batch, seq = 2, 8

    key = jax.random.PRNGKey(0)
    kx, kwt, kbt, kwg, kbg = jax.random.split(key, 5)

    # nn.Linear(hidden, hidden) init, stored pre-transposed to (in, out) so the
    # kernel computes y = x @ W + b (== PyTorch's x @ W^T + b).
    scale = 1.0 / jnp.sqrt(hidden)
    wt = jax.random.uniform(kwt, (num_layers, hidden, hidden),
                            jnp.float32, -scale, scale)
    bt = jax.random.uniform(kbt, (num_layers, 1, hidden),
                            jnp.float32, -scale, scale)
    wg = jax.random.uniform(kwg, (num_layers, hidden, hidden),
                            jnp.float32, -scale, scale)
    bg = jax.random.uniform(kbg, (num_layers, 1, hidden),
                            jnp.float32, -scale, scale)

    x = jax.random.normal(kx, (batch, seq, hidden), jnp.float32)

    ref = reference_highway(x, wt, bt, wg, bg)

    # Default path: bf16 matmul operands, f32 accumulation + elementwise.
    out_bf16 = highway_encoder(x, wt, bt, wg, bg)
    jax.block_until_ready(out_bf16)
    assert out_bf16.shape == x.shape
    assert jnp.allclose(out_bf16, ref, atol=5e-2, rtol=5e-2), \
        "bf16-matmul kernel deviates from f32 reference"

    # Full-precision matmul path: tighter check against the f32 reference.
    out_f32 = highway_encoder(x, wt, bt, wg, bg, matmul_dtype=jnp.float32)
    jax.block_until_ready(out_f32)
    assert jnp.allclose(out_f32, ref, atol=2e-2, rtol=2e-2), \
        "f32 kernel deviates from f32 reference"

    print("KERNEL_OK")
</pallas_src>

<mosaic_0001>
module attributes {stable_mosaic.version = 11 : i64} {
  func.func @highway_kernel(%arg0: i32, %arg1: memref<16x128xf32, #tpu.memory_space<vmem>>, %arg2: memref<2x128x256xbf16, #tpu.memory_space<vmem>>, %arg3: memref<2x1x256xf32, #tpu.memory_space<vmem>>, %arg4: memref<16x128xf32, #tpu.memory_space<vmem>>) attributes {dimension_semantics = [#tpu.dimension_semantics<parallel>], iteration_bounds = array<i64: 1>, scalar_prefetch = 0 : i64, scratch_operands = 0 : i64, tpu.core_type = #tpu.core_type<tc>, window_params = [{transform_indices = @transform_0, window_bounds = array<i64: 16, 128>}, {pipeline_mode = #tpu.pipeline_mode<synchronous>, transform_indices = @transform_1, window_bounds = array<i64: 2, 128, 256>}, {pipeline_mode = #tpu.pipeline_mode<synchronous>, transform_indices = @transform_2, window_bounds = array<i64: 2, 1, 256>}, {transform_indices = @transform_3, window_bounds = array<i64: 16, 128>}]} {
    %c0 = arith.constant 0 : index
    %c0_0 = arith.constant 0 : index
    %0 = vector.load %arg1[%c0, %c0_0] : memref<16x128xf32, #tpu.memory_space<vmem>>, vector<16x128xf32>
    %1 = arith.truncf %0 : vector<16x128xf32> to vector<16x128xbf16>
    %c0_1 = arith.constant 0 : index
    %c0_2 = arith.constant 0 : index
    %c0_3 = arith.constant 0 : index
    %2 = vector.load %arg2[%c0_1, %c0_2, %c0_3] : memref<2x128x256xbf16, #tpu.memory_space<vmem>>, vector<1x128x256xbf16>
    %3 = vector.shape_cast %2 : vector<1x128x256xbf16> to vector<128x256xbf16>
    %cst = arith.constant dense<0.000000e+00> : vector<16x256xf32>
    %4 = tpu.matmul %1, %3, %cst {dimension_numbers = #tpu.dot_dimension_numbers<[1], [0], [0], [1], [0, 0, 1, 1], [], []>} : vector<16x128xbf16>, vector<128x256xbf16>, vector<16x256xf32> -> vector<16x256xf32>
    %c0_4 = arith.constant 0 : index
    %c0_5 = arith.constant 0 : index
    %c0_6 = arith.constant 0 : index
    %5 = vector.load %arg3[%c0_4, %c0_5, %c0_6] : memref<2x1x256xf32, #tpu.memory_space<vmem>>, vector<1x1x256xf32>
    %6 = vector.shape_cast %5 : vector<1x1x256xf32> to vector<1x256xf32>
    %7 = vector.broadcast %6 : vector<1x256xf32> to vector<16x256xf32>
    %8 = arith.addf %4, %7 : vector<16x256xf32>
    %9 = vector.extract_strided_slice %8 {offsets = [0, 0], sizes = [16, 128], strides = [1, 1]} : vector<16x256xf32> to vector<16x128xf32>
    %cst_7 = arith.constant 0.000000e+00 : f32
    %10 = vector.broadcast %cst_7 : f32 to vector<16x128xf32>
    %11 = arith.maximumf %9, %10 : vector<16x128xf32>
    %12 = vector.extract_strided_slice %8 {offsets = [0, 128], sizes = [16, 128], strides = [1, 1]} : vector<16x256xf32> to vector<16x128xf32>
    %cst_8 = arith.constant 0.000000e+00 : f32
    %13 = vector.broadcast %cst_8 : f32 to vector<16x128xf32>
    %14 = arith.subf %13, %12 : vector<16x128xf32>
    %15 = math.exp %14 : vector<16x128xf32>
    %cst_9 = arith.constant 1.000000e+00 : f32
    %16 = vector.broadcast %cst_9 : f32 to vector<16x128xf32>
    %17 = arith.addf %16, %15 : vector<16x128xf32>
    %18 = tpu.reciprocal %17 {approx = true} : vector<16x128xf32> -> vector<16x128xf32>
    %19 = arith.subf %11, %0 : vector<16x128xf32>
    %20 = arith.mulf %18, %19 : vector<16x128xf32>
    %21 = arith.addf %0, %20 : vector<16x128xf32>
    %22 = arith.truncf %21 : vector<16x128xf32> to vector<16x128xbf16>
    %c1 = arith.constant 1 : index
    %c0_10 = arith.constant 0 : index
    %c0_11 = arith.constant 0 : index
    %23 = vector.load %arg2[%c1, %c0_10, %c0_11] : memref<2x128x256xbf16, #tpu.memory_space<vmem>>, vector<1x128x256xbf16>
    %24 = vector.shape_cast %23 : vector<1x128x256xbf16> to vector<128x256xbf16>
    %cst_12 = arith.constant dense<0.000000e+00> : vector<16x256xf32>
    %25 = tpu.matmul %22, %24, %cst_12 {dimension_numbers = #tpu.dot_dimension_numbers<[1], [0], [0], [1], [0, 0, 1, 1], [], []>} : vector<16x128xbf16>, vector<128x256xbf16>, vector<16x256xf32> -> vector<16x256xf32>
    %c1_13 = arith.constant 1 : index
    %c0_14 = arith.constant 0 : index
    %c0_15 = arith.constant 0 : index
    %26 = vector.load %arg3[%c1_13, %c0_14, %c0_15] : memref<2x1x256xf32, #tpu.memory_space<vmem>>, vector<1x1x256xf32>
    %27 = vector.shape_cast %26 : vector<1x1x256xf32> to vector<1x256xf32>
    %28 = vector.broadcast %27 : vector<1x256xf32> to vector<16x256xf32>
    %29 = arith.addf %25, %28 : vector<16x256xf32>
    %30 = vector.extract_strided_slice %29 {offsets = [0, 0], sizes = [16, 128], strides = [1, 1]} : vector<16x256xf32> to vector<16x128xf32>
    %cst_16 = arith.constant 0.000000e+00 : f32
    %31 = vector.broadcast %cst_16 : f32 to vector<16x128xf32>
    %32 = arith.maximumf %30, %31 : vector<16x128xf32>
    %33 = vector.extract_strided_slice %29 {offsets = [0, 128], sizes = [16, 128], strides = [1, 1]} : vector<16x256xf32> to vector<16x128xf32>
    %cst_17 = arith.constant 0.000000e+00 : f32
    %34 = vector.broadcast %cst_17 : f32 to vector<16x128xf32>
    %35 = arith.subf %34, %33 : vector<16x128xf32>
    %36 = math.exp %35 : vector<16x128xf32>
    %cst_18 = arith.constant 1.000000e+00 : f32
    %37 = vector.broadcast %cst_18 : f32 to vector<16x128xf32>
    %38 = arith.addf %37, %36 : vector<16x128xf32>
    %39 = tpu.reciprocal %38 {approx = true} : vector<16x128xf32> -> vector<16x128xf32>
    %40 = arith.subf %32, %21 : vector<16x128xf32>
    %41 = arith.mulf %39, %40 : vector<16x128xf32>
    %42 = arith.addf %21, %41 : vector<16x128xf32>
    %c0_19 = arith.constant 0 : index
    %c0_20 = arith.constant 0 : index
    %43 = vector.load %arg4[%c0_19, %c0_20] : memref<16x128xf32, #tpu.memory_space<vmem>>, vector<16x128xf32>
    tpu.vector_store %arg4[%c0_19, %c0_20], %42 {strides = array<i32>} : memref<16x128xf32, #tpu.memory_space<vmem>>, vector<16x128xf32>,
    return
  }
  func.func @transform_0(%arg0: i32) -> (i32, i32) {
    %c0_i32 = arith.constant 0 : i32
    %c0_i32_0 = arith.constant 0 : i32
    return %arg0, %c0_i32 : i32, i32
  }
  func.func @transform_1(%arg0: i32) -> (i32, i32, i32) {
    %c0_i32 = arith.constant 0 : i32
    %c0_i32_0 = arith.constant 0 : i32
    %c0_i32_1 = arith.constant 0 : i32
    %c0_i32_2 = arith.constant 0 : i32
    return %c0_i32, %c0_i32_0, %c0_i32_1 : i32, i32, i32
  }
  func.func @transform_2(%arg0: i32) -> (i32, i32, i32) {
    %c0_i32 = arith.constant 0 : i32
    %c0_i32_0 = arith.constant 0 : i32
    %c0_i32_1 = arith.constant 0 : i32
    %c0_i32_2 = arith.constant 0 : i32
    return %c0_i32, %c0_i32_0, %c0_i32_1 : i32, i32, i32
  }
  func.func @transform_3(%arg0: i32) -> (i32, i32) {
    %c0_i32 = arith.constant 0 : i32
    %c0_i32_0 = arith.constant 0 : i32
    return %arg0, %c0_i32 : i32, i32
  }
}

</mosaic_0001>

<llo_original>
// kernel: highway_encoder.1
$region0: #{highway_encoder.1}
  #allocation0 [shape = 'u32[]', space=smem, size = 0x4, offset = 0x4, fixed_abs, tag = 'smem constant byte address 0x4 - core index']
  #allocation1 [shape = 'u32[144,128]{1,0:T(1,128)}', space=vmem, size = 0x12000, scoped, tag = 'internal scratch']
  %s0 = inlined_call_operand.vmem [shape: f32[16,128], index: 0, kind: input, shape index: {}]
  %s1 = inlined_call_operand.vmem [shape: bf16[2,128,256], index: 1, kind: input, shape index: {}]
  %s2 = inlined_call_operand.vmem [shape: f32[2,1,256], index: 2, kind: input, shape index: {}]
  %s3 = inlined_call_operand.vmem [shape: f32[16,128], index: 3, kind: output, shape index: {}]
  %s4 = sld [smem:[#allocation0]]
  $region22: #{highway_encoder.1} parent=0
    _
  %s6 = ssub.s32 1, %s4
  %s7 = scalar_select 0, %s6, %s4
  // Predicated region
  $region2: #{highway_encoder.1} parent=0 // pred_check
    _
  $region3: #{highway_encoder.1} parent=0 // pred_check_branch
    %9 = sbr.rel (0) target = $region5
  $region4: #{highway_encoder.1} parent=0 // pred_region
    _
  $region5: #{highway_encoder.1} parent=0 // pred_fallthru
    _
  // Predicated region
  $region6: #{highway_encoder.1} parent=0 // pred_check
    _
  $region7: #{highway_encoder.1} parent=0 // pred_check_branch
    %11 = sbr.rel (0) target = $region9
  $region8: #{highway_encoder.1} parent=0 // pred_region
    _
  $region9: #{highway_encoder.1} parent=0 // pred_fallthru
    _
  // Predicated region
  $region10: #{highway_encoder.1} parent=0 // pred_check
    _
  $region11: #{highway_encoder.1} parent=0 // pred_check_branch
    %13 = sbr.rel (0) target = $region13
  $region12: #{highway_encoder.1} parent=0 // pred_region
    _
  $region13: #{highway_encoder.1} parent=0 // pred_fallthru
    _
  %v15 = vld [vmem:[%s0] sm:$0xff]
  %v16 = vld [vmem:[%s0 + $0x8] sm:$0xff]
  %v17 = vpack.c.bf16 %v16, %v15
  %v18 = vld [vmem:[%s1] sm:$0xff]
  %v19 = vld [vmem:[%s1 + $0x8] sm:$0xff]
  %v20 = vld [vmem:[%s1 + $0x10] sm:$0xff]
  %v21 = vld [vmem:[%s1 + $0x18] sm:$0xff]
  %v22 = vld [vmem:[%s1 + $0x20] sm:$0xff]
  %v23 = vld [vmem:[%s1 + $0x28] sm:$0xff]
  %v24 = vld [vmem:[%s1 + $0x30] sm:$0xff]
  %v25 = vld [vmem:[%s1 + $0x38] sm:$0xff]
  %v26 = vld [vmem:[%s1 + $0x40] sm:$0xff]
  %v27 = vld [vmem:[%s1 + $0x48] sm:$0xff]
  %v28 = vld [vmem:[%s1 + $0x50] sm:$0xff]
  %v29 = vld [vmem:[%s1 + $0x58] sm:$0xff]
  %v30 = vld [vmem:[%s1 + $0x60] sm:$0xff]
  %v31 = vld [vmem:[%s1 + $0x68] sm:$0xff]
  %v32 = vld [vmem:[%s1 + $0x70] sm:$0xff]
  %v33 = vld [vmem:[%s1 + $0x78] sm:$0xff]
  %v34 = vld [vmem:[%s2] sm:$0x3]
  %v36 = vlaneseq
  %v37 = vshrl.u32 %v36, 7
  %v38 = vsub.s32 0, %v37
  %v39 = vrot.slane %v34, %v38
  %v40 = vlaneseq
  %v41 = vshrl.u32 %v40, 7
  %v42 = vsub.s32 1, %v41
  %v43 = vrot.slane %v34, %v42
  %v62 = vunpack.c.l.b16 %v18
  %v63 = vunpack.c.h.b16 %v18
  %v64 = vunpack.c.l.b16 %v19
  %v65 = vunpack.c.h.b16 %v19
  %v66 = vunpack.c.l.b16 %v20
  %v67 = vunpack.c.h.b16 %v20
  %v68 = vunpack.c.l.b16 %v21
  %v69 = vunpack.c.h.b16 %v21
  %v70 = vunpack.c.l.b16 %v22
  %v71 = vunpack.c.h.b16 %v22
  %v72 = vunpack.c.l.b16 %v23
  %v73 = vunpack.c.h.b16 %v23
  %v74 = vunpack.c.l.b16 %v24
  %v75 = vunpack.c.h.b16 %v24
  %v76 = vunpack.c.l.b16 %v25
  %v77 = vunpack.c.h.b16 %v25
  %v78 = vunpack.c.l.b16 %v26
  %v79 = vunpack.c.h.b16 %v26
  %v80 = vunpack.c.l.b16 %v27
  %v81 = vunpack.c.h.b16 %v27
  %v82 = vunpack.c.l.b16 %v28
  %v83 = vunpack.c.h.b16 %v28
  %v84 = vunpack.c.l.b16 %v29
  %v85 = vunpack.c.h.b16 %v29
  %v86 = vunpack.c.l.b16 %v30
  %v87 = vunpack.c.h.b16 %v30
  %v88 = vunpack.c.l.b16 %v31
  %v89 = vunpack.c.h.b16 %v31
  %v90 = vunpack.c.l.b16 %v32
  %v91 = vunpack.c.h.b16 %v32
  %v92 = vunpack.c.l.b16 %v33
  %v93 = vunpack.c.h.b16 %v33
  %v94 = vpack.c.b16 %v64, %v62
  %v95 = vpack.c.b16 %v65, %v63
  %v96 = vpack.c.b16 %v68, %v66
  %v97 = vpack.c.b16 %v69, %v67
  %v98 = vpack.c.b16 %v72, %v70
  %v99 = vpack.c.b16 %v73, %v71
  %v100 = vpack.c.b16 %v76, %v74
  %v101 = vpack.c.b16 %v77, %v75
  %v102 = vpack.c.b16 %v80, %v78
  %v103 = vpack.c.b16 %v81, %v79
  %v104 = vpack.c.b16 %v84, %v82
  %v105 = vpack.c.b16 %v85, %v83
  %v106 = vpack.c.b16 %v88, %v86
  %v107 = vpack.c.b16 %v89, %v87
  %v108 = vpack.c.b16 %v92, %v90
  %v109 = vpack.c.b16 %v93, %v91
  %126 = vmatprep.subr.bf16.mxu0 %v109
  %127 = vmatpush1.bf16.msra.mxu0 %v108
  %128 = vmatprep.subr.bf16.mxu0 %v107
  %129 = vmatpush1.bf16.msra.mxu0 %v106
  %130 = vmatprep.subr.bf16.mxu0 %v105
  %131 = vmatpush1.bf16.msra.mxu0 %v104
  %132 = vmatprep.subr.bf16.mxu0 %v103
  %133 = vmatpush1.bf16.msra.mxu0 %v102
  %134 = vmatprep.subr.bf16.mxu0 %v101
  %135 = vmatpush1.bf16.msra.mxu0 %v100
  %136 = vmatprep.subr.bf16.mxu0 %v99
  %137 = vmatpush1.bf16.msra.mxu0 %v98
  %138 = vmatprep.subr.bf16.mxu0 %v97
  %139 = vmatpush1.bf16.msra.mxu0 %v96
  %140 = vmatprep.subr.bf16.mxu0 %v95
  %141 = vmatpush1.bf16.msra.mxu0 %v94
  %142 = vmatprep.subr.bf16.mxu0 0
  %143 = vmatpush2.bf16.msra.mxu0 0
  %144 = vmatprep.subr.bf16.mxu0 0
  %145 = vmatpush2.bf16.msra.mxu0 0
  %146 = vmatprep.subr.bf16.mxu0 0
  %147 = vmatpush2.bf16.msra.mxu0 0
  %148 = vmatprep.subr.bf16.mxu0 0
  %149 = vmatpush2.bf16.msra.mxu0 0
  %150 = vmatprep.subr.bf16.mxu0 0
  %151 = vmatpush2.bf16.msra.mxu0 0
  %152 = vmatprep.subr.bf16.mxu0 0
  %153 = vmatpush2.bf16.msra.mxu0 0
  %154 = vmatprep.subr.bf16.mxu0 0
  %155 = vmatpush2.bf16.msra.mxu0 0
  %156 = vmatprep.subr.bf16.mxu0 0
  %157 = vmatpush2.bf16.msra.mxu0 0
  %158 = vmatprep.mubr.bf16.mxu0 0
  %159 = vmatmul.mubr.bf16.gmra.mxu0 %v17
  %v160 = vpop.f32.mrf.mxu0
  %v161 = vadd.f32 %v39, %v160
  %v162 = vpop.f32.mrf.mxu0
  %v163 = vadd.f32 %v43, %v162
  %v164 = vpop.f32.mrf.mxu0
  %v165 = vadd.f32 %v39, %v164
  %v166 = vpop.f32.mrf.mxu0
  %v167 = vadd.f32 %v43, %v166
  %168 = vdwg.mxu0
  %v169 = vmax.f32 %v161, 0.0
  %v170 = vmax.f32 %v165, 0.0
  %v171 = vsub.f32 0.0, %v163
  %v172 = vsub.f32 0.0, %v167
  %v173 = vmul.f32 %v171, 1.442695
  %v174 = vpow.pop %v173
  %v175 = vmul.f32 %v172, 1.442695
  %v176 = vpow.pop %v175
  %v177 = vadd.f32 %v174, 1.0
  %v178 = vadd.f32 %v176, 1.0
  %v179 = vrcp.pop %v177
  %v180 = vrcp.pop %v178
  %v181 = vsub.f32 %v169, %v15
  %v182 = vsub.f32 %v170, %v16
  %v183 = vmul.f32 %v179, %v181
  %v184 = vmul.f32 %v180, %v182
  %v185 = vadd.f32 %v15, %v183
  %v186 = vadd.f32 %v16, %v184
  %v187 = vpack.c.bf16 %v186, %v185
  %s188 = scalar_lea.vmem %s1, 128
  %v189 = vld [vmem:[%s188] sm:$0xff]
  %v190 = vld [vmem:[%s188 + $0x8] sm:$0xff]
  %v191 = vld [vmem:[%s188 + $0x10] sm:$0xff]
  %v192 = vld [vmem:[%s188 + $0x18] sm:$0xff]
  %v193 = vld [vmem:[%s188 + $0x20] sm:$0xff]
  %v194 = vld [vmem:[%s188 + $0x28] sm:$0xff]
  %v195 = vld [vmem:[%s188 + $0x30] sm:$0xff]
  %v196 = vld [vmem:[%s188 + $0x38] sm:$0xff]
  %v197 = vld [vmem:[%s188 + $0x40] sm:$0xff]
  %v198 = vld [vmem:[%s188 + $0x48] sm:$0xff]
  %v199 = vld [vmem:[%s188 + $0x50] sm:$0xff]
  %v200 = vld [vmem:[%s188 + $0x58] sm:$0xff]
  %v201 = vld [vmem:[%s188 + $0x60] sm:$0xff]
  %v202 = vld [vmem:[%s188 + $0x68] sm:$0xff]
  %v203 = vld [vmem:[%s188 + $0x70] sm:$0xff]
  %v204 = vld [vmem:[%s188 + $0x78] sm:$0xff]
  %s205 = scalar_lea.vmem %s2, 2
  %v206 = vld [vmem:[%s205] sm:$0x3]
  %v208 = vlaneseq
  %v209 = vshrl.u32 %v208, 7
  %v210 = vsub.s32 0, %v209
  %v211 = vrot.slane %v206, %v210
  %v212 = vlaneseq
  %v213 = vshrl.u32 %v212, 7
  %v214 = vsub.s32 1, %v213
  %v215 = vrot.slane %v206, %v214
  %v234 = vunpack.c.l.b16 %v189
  %v235 = vunpack.c.h.b16 %v189
  %v236 = vunpack.c.l.b16 %v190
  %v237 = vunpack.c.h.b16 %v190
  %v238 = vunpack.c.l.b16 %v191
  %v239 = vunpack.c.h.b16 %v191
  %v240 = vunpack.c.l.b16 %v192
  %v241 = vunpack.c.h.b16 %v192
  %v242 = vunpack.c.l.b16 %v193
  %v243 = vunpack.c.h.b16 %v193
  %v244 = vunpack.c.l.b16 %v194
  %v245 = vunpack.c.h.b16 %v194
  %v246 = vunpack.c.l.b16 %v195
  %v247 = vunpack.c.h.b16 %v195
  %v248 = vunpack.c.l.b16 %v196
  %v249 = vunpack.c.h.b16 %v196
  %v250 = vunpack.c.l.b16 %v197
  %v251 = vunpack.c.h.b16 %v197
  %v252 = vunpack.c.l.b16 %v198
  %v253 = vunpack.c.h.b16 %v198
  %v254 = vunpack.c.l.b16 %v199
  %v255 = vunpack.c.h.b16 %v199
  %v256 = vunpack.c.l.b16 %v200
  %v257 = vunpack.c.h.b16 %v200
  %v258 = vunpack.c.l.b16 %v201
  %v259 = vunpack.c.h.b16 %v201
  %v260 = vunpack.c.l.b16 %v202
  %v261 = vunpack.c.h.b16 %v202
  %v262 = vunpack.c.l.b16 %v203
  %v263 = vunpack.c.h.b16 %v203
  %v264 = vunpack.c.l.b16 %v204
  %v265 = vunpack.c.h.b16 %v204
  %v266 = vpack.c.b16 %v236, %v234
  %v267 = vpack.c.b16 %v237, %v235
  %v268 = vpack.c.b16 %v240, %v238
  %v269 = vpack.c.b16 %v241, %v239
  %v270 = vpack.c.b16 %v244, %v242
  %v271 = vpack.c.b16 %v245, %v243
  %v272 = vpack.c.b16 %v248, %v246
  %v273 = vpack.c.b16 %v249, %v247
  %v274 = vpack.c.b16 %v252, %v250
  %v275 = vpack.c.b16 %v253, %v251
  %v276 = vpack.c.b16 %v256, %v254
  %v277 = vpack.c.b16 %v257, %v255
  %v278 = vpack.c.b16 %v260, %v258
  %v279 = vpack.c.b16 %v261, %v259
  %v280 = vpack.c.b16 %v264, %v262
  %v281 = vpack.c.b16 %v265, %v263
  %298 = vmatprep.subr.bf16.mxu0 %v281
  %299 = vmatpush1.bf16.msra.mxu0 %v280
  %300 = vmatprep.subr.bf16.mxu0 %v279
  %301 = vmatpush1.bf16.msra.mxu0 %v278
  %302 = vmatprep.subr.bf16.mxu0 %v277
  %303 = vmatpush1.bf16.msra.mxu0 %v276
  %304 = vmatprep.subr.bf16.mxu0 %v275
  %305 = vmatpush1.bf16.msra.mxu0 %v274
  %306 = vmatprep.subr.bf16.mxu0 %v273
  %307 = vmatpush1.bf16.msra.mxu0 %v272
  %308 = vmatprep.subr.bf16.mxu0 %v271
  %309 = vmatpush1.bf16.msra.mxu0 %v270
  %310 = vmatprep.subr.bf16.mxu0 %v269
  %311 = vmatpush1.bf16.msra.mxu0 %v268
  %312 = vmatprep.subr.bf16.mxu0 %v267
  %313 = vmatpush1.bf16.msra.mxu0 %v266
  %314 = vmatprep.subr.bf16.mxu0 0
  %315 = vmatpush2.bf16.msra.mxu0 0
  %316 = vmatprep.subr.bf16.mxu0 0
  %317 = vmatpush2.bf16.msra.mxu0 0
  %318 = vmatprep.subr.bf16.mxu0 0
  %319 = vmatpush2.bf16.msra.mxu0 0
  %320 = vmatprep.subr.bf16.mxu0 0
  %321 = vmatpush2.bf16.msra.mxu0 0
  %322 = vmatprep.subr.bf16.mxu0 0
  %323 = vmatpush2.bf16.msra.mxu0 0
  %324 = vmatprep.subr.bf16.mxu0 0
  %325 = vmatpush2.bf16.msra.mxu0 0
  %326 = vmatprep.subr.bf16.mxu0 0
  %327 = vmatpush2.bf16.msra.mxu0 0
  %328 = vmatprep.subr.bf16.mxu0 0
  %329 = vmatpush2.bf16.msra.mxu0 0
  %330 = vmatprep.mubr.bf16.mxu0 0
  %331 = vmatmul.mubr.bf16.gmra.mxu0 %v187
  %v332 = vpop.f32.mrf.mxu0
  %v333 = vadd.f32 %v211, %v332
  %v334 = vpop.f32.mrf.mxu0
  %v335 = vadd.f32 %v215, %v334
  %v336 = vpop.f32.mrf.mxu0
  %v337 = vadd.f32 %v211, %v336
  %v338 = vpop.f32.mrf.mxu0
  %v339 = vadd.f32 %v215, %v338
  %340 = vdwg.mxu0
  %v341 = vmax.f32 %v333, 0.0
  %v342 = vmax.f32 %v337, 0.0
  %v343 = vsub.f32 0.0, %v335
  %v344 = vsub.f32 0.0, %v339
  %v345 = vmul.f32 %v343, 1.442695
  %v346 = vpow.pop %v345
  %v347 = vmul.f32 %v344, 1.442695
  %v348 = vpow.pop %v347
  %v349 = vadd.f32 %v346, 1.0
  %v350 = vadd.f32 %v348, 1.0
  %v351 = vrcp.pop %v349
  %v352 = vrcp.pop %v350
  %v353 = vsub.f32 %v341, %v185
  %v354 = vsub.f32 %v342, %v186
  %v355 = vmul.f32 %v351, %v353
  %v356 = vmul.f32 %v352, %v354
  %v357 = vadd.f32 %v185, %v355
  %v358 = vadd.f32 %v186, %v356
  %359 = vst [vmem:[%s3] sm:$0xff] %v357
  %360 = vst [vmem:[%s3 + $0x8] sm:$0xff] %v358
  // Predicated region
  $region14: #{highway_encoder.1} parent=0 // pred_check
    _
  $region15: #{highway_encoder.1} parent=0 // pred_check_branch
    %362 = sbr.rel (0) target = $region17
  $region16: #{highway_encoder.1} parent=0 // pred_region
    _
  $region17: #{highway_encoder.1} parent=0 // pred_fallthru
    _
  // Predicated region
  $region18: #{highway_encoder.1} parent=0 // pred_check
    _
  $region19: #{highway_encoder.1} parent=0 // pred_check_branch
    %364 = sbr.rel (0) target = $region21
  $region20: #{highway_encoder.1} parent=0 // pred_region
    _
  $region21: #{highway_encoder.1} parent=0 // pred_fallthru
    _

</llo_original>
